<compile_context>
chip_gen: v5e
topology: v5e:2x2
jax: 0.10.0
libtpu: 0.0.40
codegen_flags: <defaults>
</compile_context>

<pallas_src>
import jax
import jax.numpy as jnp
from jax.experimental import pallas as pl
from jax.experimental.pallas import tpu as pltpu

_NEG_INF = -1e30  # must stay f32; not representable in bf16


# ----------------------------------------------------------------------------
# Helpers.
# ----------------------------------------------------------------------------
def _round_up(x, m):
    return ((x + m - 1) // m) * m


def _pad2d(a, rows, cols, fill=0.0):
    pr, pc = rows - a.shape[0], cols - a.shape[1]
    if pr or pc:
        a = jnp.pad(a, ((0, pr), (0, pc)), constant_values=fill)
    return a


def _vmem_capacity_bytes():
    """Per-core VMEM capacity; conservative fallback = v7x (64 MiB)."""
    try:
        return int(pltpu.get_tpu_info().vmem_capacity_bytes)
    except Exception:
        return 64 * 1024 * 1024


def _resident_spec(block_shape, index_map):
    """Single-buffered BlockSpec for operands whose block index never changes
    (weights / biases / full support matrix). Falls back to the default spec if
    pipeline_mode isn't available in this JAX version."""
    try:
        return pl.BlockSpec(block_shape, index_map, pipeline_mode=pl.Buffered(1))
    except Exception:
        return pl.BlockSpec(block_shape, index_map)


def _vmem_limit(est_bytes, cap):
    return int(min(cap - (2 << 20), max(est_bytes + (8 << 20), 32 << 20)))


def _tiled_params(est_bytes, cap):
    return pltpu.CompilerParams(
        dimension_semantics=("parallel",),
        vmem_limit_bytes=_vmem_limit(est_bytes, cap),
    )


# Per-call VMEM footprint estimates (bf16 = 2 B, f32 = 4 B). Streaming blocks
# counted double-buffered, residents single-buffered.
def _support_bytes(tm, fin, fout):
    return 2 * tm * fin * 2 + fin * fout * 2 + 2 * tm * fout * 2 + tm * fout * 4


def _agg1_bytes(tm, np_, hp, cp):
    return (2 * tm * np_ * 2        # adj row tile (double-buffered)
            + np_ * hp * 2          # resident s1
            + hp * cp * 2           # resident W2
            + 2 * tm * cp * 2       # s2 output tile
            + tm * hp * 4 + tm * cp * 4)  # f32 temps (h, s2)


def _agg2_bytes(tm, np_, cp):
    return (2 * tm * np_ * 2 + np_ * cp * 2 + 2 * tm * cp * 4 + 2 * tm * cp * 4)


def _fused_vmem_bytes(np_, fp, hp, cp):
    return (np_ * np_ * 2           # adj
            + np_ * fp * 2          # x
            + fp * hp * 2 + hp * cp * 2   # W1, W2
            + np_ * cp * 4          # output
            + 2 * np_ * hp * 4      # s1 + h f32 temps
            + 2 * np_ * cp * 4)     # s2 + logits f32 temps


def _choose_tm(n, fp, hp, cp, cap):
    """Largest row tile whose blocks fit the per-core VMEM budget."""
    budget = cap - (8 << 20)
    for tm in (512, 256, 128):
        np_ = _round_up(max(n, tm), tm)
        need = max(_support_bytes(tm, fp, hp),
                   _agg1_bytes(tm, np_, hp, cp),
                   _agg2_bytes(tm, np_, cp))
        if need <= budget:
            return tm
    return 128


# ----------------------------------------------------------------------------
# Fused single-kernel path (whole forward in one grid=() pallas_call).
# ----------------------------------------------------------------------------
def _gcn_fused_kernel(x_ref, w1_ref, b1_ref, w2_ref, b2_ref, adj_ref, out_ref):
    adj = adj_ref[...]                                                # (Np, Np) bf16
    # Layer 1: h = relu(adj @ (x @ W1) + b1)
    s1 = jnp.dot(x_ref[...], w1_ref[...], preferred_element_type=jnp.float32)
    h = jnp.dot(adj, s1.astype(adj.dtype), preferred_element_type=jnp.float32)
    h = jnp.maximum(h + b1_ref[...], 0.0)
    # Layer 2: logits = adj @ (h @ W2) + b2   (padded class lanes get -1e30 via b2)
    s2 = jnp.dot(h.astype(w2_ref.dtype), w2_ref[...],
                 preferred_element_type=jnp.float32)
    logits = jnp.dot(adj, s2.astype(adj.dtype),
                     preferred_element_type=jnp.float32) + b2_ref[...]
    # log_softmax over classes.
    m = jnp.max(logits, axis=-1, keepdims=True)
    s = logits - m
    lse = jnp.log(jnp.sum(jnp.exp(s), axis=-1, keepdims=True))
    out_ref[...] = (s - lse).astype(out_ref.dtype)


def gcn_forward_fused(x, adj, params, nclass):
    w1, b1, w2, b2 = params
    n, nfeat = x.shape
    nhid = w1.shape[1]
    np_ = _round_up(n, 128)
    fp = _round_up(nfeat, 128)
    hp = _round_up(nhid, 128)
    cp = _round_up(nclass, 128)

    x_p = _pad2d(x, np_, fp).astype(jnp.bfloat16)
    adj_p = _pad2d(adj, np_, np_).astype(jnp.bfloat16)
    w1_p = _pad2d(w1, fp, hp).astype(jnp.bfloat16)
    w2_p = _pad2d(w2, hp, cp).astype(jnp.bfloat16)
    b1_p = _pad2d(b1.reshape(1, -1).astype(jnp.float32), 1, hp)
    # Class mask encoded in (f32) bias padding: padded logit lanes become -1e30.
    b2_p = _pad2d(b2.reshape(1, -1).astype(jnp.float32), 1, cp, fill=_NEG_INF)

    cap = _vmem_capacity_bytes()
    est = _fused_vmem_bytes(np_, fp, hp, cp)
    out = pl.pallas_call(
        _gcn_fused_kernel,
        out_shape=jax.ShapeDtypeStruct((np_, cp), jnp.float32),
        grid=(),
        in_specs=[
            pl.BlockSpec(x_p.shape, lambda: (0, 0)),
            pl.BlockSpec(w1_p.shape, lambda: (0, 0)),
            pl.BlockSpec(b1_p.shape, lambda: (0, 0)),
            pl.BlockSpec(w2_p.shape, lambda: (0, 0)),
            pl.BlockSpec(b2_p.shape, lambda: (0, 0)),
            pl.BlockSpec(adj_p.shape, lambda: (0, 0)),
        ],
        out_specs=pl.BlockSpec((np_, cp), lambda: (0, 0)),
        compiler_params=pltpu.CompilerParams(
            vmem_limit_bytes=_vmem_limit(est, cap)),
    )(x_p, w1_p, b1_p, w2_p, b2_p, adj_p)
    return out[:n, :nclass]


# ----------------------------------------------------------------------------
# Row-tiled path (large graphs): 3 kernels, node-row axis megacore-parallel.
# ----------------------------------------------------------------------------
def _support_kernel(x_ref, w_ref, out_ref):
    out_ref[...] = jnp.dot(x_ref[...], w_ref[...],
                           preferred_element_type=jnp.float32).astype(out_ref.dtype)


def _agg1_kernel(adj_ref, s1_ref, b1_ref, w2_ref, s2_ref):
    # h = relu(adj_tile @ s1 + b1); s2 = h @ W2  (h never round-trips to HBM).
    h = jnp.dot(adj_ref[...], s1_ref[...], preferred_element_type=jnp.float32)
    h = jnp.maximum(h + b1_ref[...], 0.0)
    s2_ref[...] = jnp.dot(h.astype(w2_ref.dtype), w2_ref[...],
                          preferred_element_type=jnp.float32).astype(s2_ref.dtype)


def _agg2_kernel(adj_ref, s2_ref, b2_ref, out_ref):
    # logits = adj_tile @ s2 + b2 (padded class lanes carry -1e30 via b2 padding).
    logits = jnp.dot(adj_ref[...], s2_ref[...],
                     preferred_element_type=jnp.float32) + b2_ref[...]
    m = jnp.max(logits, axis=-1, keepdims=True)
    s = logits - m
    lse = jnp.log(jnp.sum(jnp.exp(s), axis=-1, keepdims=True))
    out_ref[...] = (s - lse).astype(out_ref.dtype)


def gcn_forward_tiled(x, adj, params, nclass, *, tm=None):
    w1, b1, w2, b2 = params
    n, nfeat = x.shape
    nhid = w1.shape[1]
    fp = _round_up(nfeat, 128)
    hp = _round_up(nhid, 128)
    cp = _round_up(nclass, 128)
    cap = _vmem_capacity_bytes()
    if tm is None:
        tm = _choose_tm(n, fp, hp, cp, cap)
    np_ = _round_up(max(n, tm), tm)

    x_p = _pad2d(x, np_, fp).astype(jnp.bfloat16)
    adj_p = _pad2d(adj, np_, np_).astype(jnp.bfloat16)
    w1_p = _pad2d(w1, fp, hp).astype(jnp.bfloat16)
    w2_p = _pad2d(w2, hp, cp).astype(jnp.bfloat16)
    b1_p = _pad2d(b1.reshape(1, -1).astype(jnp.float32), 1, hp)
    b2_p = _pad2d(b2.reshape(1, -1).astype(jnp.float32), 1, cp, fill=_NEG_INF)

    grid = (np_ // tm,)

    # K1: s1 = x @ W1
    s1 = pl.pallas_call(
        _support_kernel,
        out_shape=jax.ShapeDtypeStruct((np_, hp), jnp.bfloat16),
        grid=grid,
        in_specs=[pl.BlockSpec((tm, fp), lambda i: (i, 0)),
                  _resident_spec((fp, hp), lambda i: (0, 0))],
        out_specs=pl.BlockSpec((tm, hp), lambda i: (i, 0)),
        compiler_params=_tiled_params(_support_bytes(tm, fp, hp), cap),
    )(x_p, w1_p)

    # K2: s2 = relu(adj @ s1 + b1) @ W2   (second GraphConvolution's support fused in)
    s2 = pl.pallas_call(
        _agg1_kernel,
        out_shape=jax.ShapeDtypeStruct((np_, cp), jnp.bfloat16),
        grid=grid,
        in_specs=[pl.BlockSpec((tm, np_), lambda i: (i, 0)),
                  _resident_spec((np_, hp), lambda i: (0, 0)),
                  _resident_spec((1, hp), lambda i: (0, 0)),
                  _resident_spec((hp, cp), lambda i: (0, 0))],
        out_specs=pl.BlockSpec((tm, cp), lambda i: (i, 0)),
        compiler_params=_tiled_params(_agg1_bytes(tm, np_, hp, cp), cap),
    )(adj_p, s1, b1_p, w2_p)

    # K3: out = log_softmax(adj @ s2 + b2)
    out = pl.pallas_call(
        _agg2_kernel,
        out_shape=jax.ShapeDtypeStruct((np_, cp), jnp.float32),
        grid=grid,
        in_specs=[pl.BlockSpec((tm, np_), lambda i: (i, 0)),
                  _resident_spec((np_, cp), lambda i: (0, 0)),
                  _resident_spec((1, cp), lambda i: (0, 0))],
        out_specs=pl.BlockSpec((tm, cp), lambda i: (i, 0)),
        compiler_params=_tiled_params(_agg2_bytes(tm, np_, cp), cap),
    )(adj_p, s2, b2_p)
    return out[:n, :nclass]


# ----------------------------------------------------------------------------
# Public forward + params.
# ----------------------------------------------------------------------------
def gcn_forward(x, adj, params, *, force_tiled=False):
    """GCN.forward(x, adj, quant=False) in eval mode (dropout = identity)."""
    nclass = params[2].shape[1]
    n, nfeat = x.shape
    nhid = params[0].shape[1]
    np_ = _round_up(n, 128)
    fp = _round_up(nfeat, 128)
    hp = _round_up(nhid, 128)
    cp = _round_up(nclass, 128)
    cap = _vmem_capacity_bytes()
    # Byte-based dispatch: keep the whole graph resident only if it fits VMEM.
    fits_fused = _fused_vmem_bytes(np_, fp, hp, cp) <= cap - (16 << 20)
    if force_tiled or not fits_fused:
        return gcn_forward_tiled(x, adj, params, nclass)
    return gcn_forward_fused(x, adj, params, nclass)


def init_params(key, nfeat, nhid, nclass):
    # GraphConvolution init: uniform(-stdv, stdv), stdv = 1/sqrt(out_features)
    k1, k2, k3, k4 = jax.random.split(key, 4)
    s1 = 1.0 / jnp.sqrt(nhid)
    s2 = 1.0 / jnp.sqrt(nclass)
    w1 = jax.random.uniform(k1, (nfeat, nhid), jnp.float32, -s1, s1)
    b1 = jax.random.uniform(k2, (nhid,), jnp.float32, -s1, s1)
    w2 = jax.random.uniform(k3, (nhid, nclass), jnp.float32, -s2, s2)
    b2 = jax.random.uniform(k4, (nclass,), jnp.float32, -s2, s2)
    return (w1, b1, w2, b2)


def ref_forward(x, adj, params):
    """Pure-JAX reference mirroring the kernel's bf16 MXU-input casts."""
    w1, b1, w2, b2 = params
    xb, ab = x.astype(jnp.bfloat16), adj.astype(jnp.bfloat16)
    w1b, w2b = w1.astype(jnp.bfloat16), w2.astype(jnp.bfloat16)
    s1 = jnp.dot(xb, w1b, preferred_element_type=jnp.float32)
    h = jnp.dot(ab, s1.astype(jnp.bfloat16), preferred_element_type=jnp.float32) + b1
    h = jnp.maximum(h, 0.0)
    s2 = jnp.dot(h.astype(jnp.bfloat16), w2b, preferred_element_type=jnp.float32)
    logits = jnp.dot(ab, s2.astype(jnp.bfloat16),
                     preferred_element_type=jnp.float32) + b2
    return jax.nn.log_softmax(logits, axis=1)


if __name__ == "__main__":
    def make_inputs(key, n, nfeat, nhid, nclass, p_edge):
        kx, ka, kp = jax.random.split(key, 3)
        x = jax.random.normal(kx, (n, nfeat), jnp.float32)
        # Symmetric, row-normalized dense adjacency with self-loops.
        a = (jax.random.uniform(ka, (n, n)) < p_edge).astype(jnp.float32)
        a = jnp.maximum(a, a.T) + jnp.eye(n, dtype=jnp.float32)
        adj = a / jnp.sum(a, axis=1, keepdims=True)
        params = init_params(kp, nfeat, nhid, nclass)
        return x, adj, params

    key = jax.random.PRNGKey(0)
    k1, k2 = jax.random.split(key)

    # 1) Toy size -> fully fused single-kernel path.
    x, adj, params = make_inputs(k1, 64, 32, 16, 8, 0.1)
    out = jax.block_until_ready(gcn_forward(x, adj, params))
    ref = ref_forward(x, adj, params)
    assert out.shape == (64, 8)
    assert jnp.allclose(out, ref, atol=1e-3, rtol=1e-3), "fused path mismatch"

    # 2) Larger graph -> row-tiled, megacore-parallel path (forced).
    x2, adj2, params2 = make_inputs(k2, 256, 300, 64, 7, 0.05)
    out2 = jax.block_until_ready(gcn_forward(x2, adj2, params2, force_tiled=True))
    ref2 = ref_forward(x2, adj2, params2)
    assert out2.shape == (256, 7)
    assert jnp.allclose(out2, ref2, atol=1e-3, rtol=1e-3), "tiled path mismatch"

    print("KERNEL_OK")
</pallas_src>

<mosaic_0001>
module attributes {stable_mosaic.version = 11 : i64} {
  func.func @_gcn_fused_kernel(%arg0: memref<128x128xbf16, #tpu.memory_space<vmem>>, %arg1: memref<128x128xbf16, #tpu.memory_space<vmem>>, %arg2: memref<1x128xf32, #tpu.memory_space<vmem>>, %arg3: memref<128x128xbf16, #tpu.memory_space<vmem>>, %arg4: memref<1x128xf32, #tpu.memory_space<vmem>>, %arg5: memref<128x128xbf16, #tpu.memory_space<vmem>>, %arg6: memref<128x128xf32, #tpu.memory_space<vmem>>) attributes {dimension_semantics = [], scalar_prefetch = 0 : i64, scratch_operands = 0 : i64, tpu.core_type = #tpu.core_type<tc>} {
    %c0 = arith.constant 0 : index
    %c0_0 = arith.constant 0 : index
    %0 = vector.load %arg5[%c0, %c0_0] : memref<128x128xbf16, #tpu.memory_space<vmem>>, vector<128x128xbf16>
    %c0_1 = arith.constant 0 : index
    %c0_2 = arith.constant 0 : index
    %1 = vector.load %arg0[%c0_1, %c0_2] : memref<128x128xbf16, #tpu.memory_space<vmem>>, vector<128x128xbf16>
    %c0_3 = arith.constant 0 : index
    %c0_4 = arith.constant 0 : index
    %2 = vector.load %arg1[%c0_3, %c0_4] : memref<128x128xbf16, #tpu.memory_space<vmem>>, vector<128x128xbf16>
    %cst = arith.constant dense<0.000000e+00> : vector<128x128xf32>
    %3 = tpu.matmul %1, %2, %cst {dimension_numbers = #tpu.dot_dimension_numbers<[1], [0], [0], [1], [0, 0, 1, 1], [], []>} : vector<128x128xbf16>, vector<128x128xbf16>, vector<128x128xf32> -> vector<128x128xf32>
    %4 = arith.truncf %3 : vector<128x128xf32> to vector<128x128xbf16>
    %cst_5 = arith.constant dense<0.000000e+00> : vector<128x128xf32>
    %5 = tpu.matmul %0, %4, %cst_5 {dimension_numbers = #tpu.dot_dimension_numbers<[1], [0], [0], [1], [0, 0, 1, 1], [], []>} : vector<128x128xbf16>, vector<128x128xbf16>, vector<128x128xf32> -> vector<128x128xf32>
    %c0_6 = arith.constant 0 : index
    %c0_7 = arith.constant 0 : index
    %6 = vector.load %arg2[%c0_6, %c0_7] : memref<1x128xf32, #tpu.memory_space<vmem>>, vector<1x128xf32>
    %7 = vector.broadcast %6 : vector<1x128xf32> to vector<128x128xf32>
    %8 = arith.addf %5, %7 : vector<128x128xf32>
    %cst_8 = arith.constant 0.000000e+00 : f32
    %9 = vector.broadcast %cst_8 : f32 to vector<128x128xf32>
    %10 = arith.maximumf %8, %9 : vector<128x128xf32>
    %11 = arith.truncf %10 : vector<128x128xf32> to vector<128x128xbf16>
    %c0_9 = arith.constant 0 : index
    %c0_10 = arith.constant 0 : index
    %12 = vector.load %arg3[%c0_9, %c0_10] : memref<128x128xbf16, #tpu.memory_space<vmem>>, vector<128x128xbf16>
    %cst_11 = arith.constant dense<0.000000e+00> : vector<128x128xf32>
    %13 = tpu.matmul %11, %12, %cst_11 {dimension_numbers = #tpu.dot_dimension_numbers<[1], [0], [0], [1], [0, 0, 1, 1], [], []>} : vector<128x128xbf16>, vector<128x128xbf16>, vector<128x128xf32> -> vector<128x128xf32>
    %14 = arith.truncf %13 : vector<128x128xf32> to vector<128x128xbf16>
    %cst_12 = arith.constant dense<0.000000e+00> : vector<128x128xf32>
    %15 = tpu.matmul %0, %14, %cst_12 {dimension_numbers = #tpu.dot_dimension_numbers<[1], [0], [0], [1], [0, 0, 1, 1], [], []>} : vector<128x128xbf16>, vector<128x128xbf16>, vector<128x128xf32> -> vector<128x128xf32>
    %c0_13 = arith.constant 0 : index
    %c0_14 = arith.constant 0 : index
    %16 = vector.load %arg4[%c0_13, %c0_14] : memref<1x128xf32, #tpu.memory_space<vmem>>, vector<1x128xf32>
    %17 = vector.broadcast %16 : vector<1x128xf32> to vector<128x128xf32>
    %18 = arith.addf %15, %17 : vector<128x128xf32>
    %cst_15 = arith.constant dense<0xFF800000> : vector<128xf32>
    %19 = vector.multi_reduction <maximumf>, %18, %cst_15 [1] : vector<128x128xf32> to vector<128xf32>
    %20 = vector.shape_cast %19 : vector<128xf32> to vector<128x1xf32>
    %21 = vector.broadcast %20 : vector<128x1xf32> to vector<128x128xf32>
    %22 = arith.subf %18, %21 : vector<128x128xf32>
    %23 = math.exp %22 : vector<128x128xf32>
    %cst_16 = arith.constant dense<0.000000e+00> : vector<128xf32>
    %24 = vector.multi_reduction <add>, %23, %cst_16 [1] : vector<128x128xf32> to vector<128xf32>
    %25 = vector.shape_cast %24 : vector<128xf32> to vector<128x1xf32>
    %26 = math.log %25 : vector<128x1xf32>
    %27 = vector.broadcast %26 : vector<128x1xf32> to vector<128x128xf32>
    %28 = arith.subf %22, %27 : vector<128x128xf32>
    %c0_17 = arith.constant 0 : index
    %c0_18 = arith.constant 0 : index
    %29 = vector.load %arg6[%c0_17, %c0_18] : memref<128x128xf32, #tpu.memory_space<vmem>>, vector<128x128xf32>
    tpu.vector_store %arg6[%c0_17, %c0_18], %28 {strides = array<i32>} : memref<128x128xf32, #tpu.memory_space<vmem>>, vector<128x128xf32>,
    return
  }
}

</mosaic_0001>

<llo_original>
// kernel: tpu_custom_call.1
$region0: #{tpu_custom_call.1}
  #allocation0 [shape = 'u32[]', space=smem, size = 0x4, offset = 0x4, fixed_abs, tag = 'smem constant byte address 0x4 - core index']
  #allocation1 [shape = 'u32[72,128]{1,0:T(1,128)}', space=vmem, size = 0x9000, scoped, tag = 'internal scratch']
  %s0 = inlined_call_operand.hbm [shape: bf16[128,128], index: 0, kind: input, shape index: {}]
  %s1 = inlined_call_operand.hbm [shape: bf16[128,128], index: 1, kind: input, shape index: {}]
  %s2 = inlined_call_operand.vmem [shape: f32[1,128], index: 2, kind: input, shape index: {}]
  %s3 = inlined_call_operand.hbm [shape: bf16[128,128], index: 3, kind: input, shape index: {}]
  %s4 = inlined_call_operand.vmem [shape: f32[1,128], index: 4, kind: input, shape index: {}]
  %s5 = inlined_call_operand.hbm [shape: bf16[128,128], index: 5, kind: input, shape index: {}]
  %s6 = inlined_call_operand.hbm [shape: f32[128,128], index: 6, kind: output, shape index: {}]
  %s7 = sld [smem:[#allocation0]]
  $region50: #{tpu_custom_call.1} parent=0
    _
  %s9 = ssub.s32 1, %s7
  %s10 = scalar_select 0, %s9, %s7
  $region1: #{tpu_custom_call.1} parent=0
    #allocation2 [shape = 'u8[32768]{0}', space=vmem, size = 0x8000, scoped, tag = 'input window, operand 0, single buffered']
    #allocation3 [shape = 's32[1]{0}', space=sflag, size = 0x4, scoped, tag = 'scoped memory for tpu_custom_call.1']
    #allocation4 [shape = 's32[1]{0}', space=sflag, size = 0x4, scoped, tag = 'scoped memory for tpu_custom_call.1']
    #allocation5 [shape = 'u8[32768]{0}', space=vmem, size = 0x8000, scoped, tag = 'input window, operand 1, single buffered']
    #allocation6 [shape = 's32[1]{0}', space=sflag, size = 0x4, scoped, tag = 'scoped memory for tpu_custom_call.1']
    #allocation7 [shape = 'u8[32768]{0}', space=vmem, size = 0x8000, scoped, tag = 'input window, operand 3, single buffered']
    #allocation8 [shape = 'u8[32768]{0}', space=vmem, size = 0x8000, scoped, tag = 'input window, operand 5, single buffered']
    #allocation9 [shape = 's32[1]{0}', space=sflag, size = 0x4, scoped, tag = 'scoped memory for tpu_custom_call.1']
    #allocation10 [shape = 'u8[65536]{0}', space=vmem, size = 0x10000, scoped, tag = 'output window, operand 0, single buffered']
    %11 = vsyncpa [#allocation3], 0
    %12 = vsyncpa [#allocation6], 0
    %13 = vsyncpa [#allocation9], 0
    %14 = vsyncpa [#allocation4], 0
    // Predicated region
    $region2: #{tpu_custom_call.1} parent=1 // pred_check
      _
    $region3: #{tpu_custom_call.1} parent=1 // pred_check_branch
      %16 = sbr.rel (0) target = $region5
    $region4: #{tpu_custom_call.1} parent=1 // pred_region
      %18 = vsyncadd [#allocation3], 0
      %s19 = sshll.u32 %s0, 4
      %s20 = int_to_ptr.hbm [resolvable:$true] %s19
      %s21 = sshll.u32 [#allocation2], 4
      %s22 = int_to_ptr.vmem [resolvable:$true] %s21
      %27 = dma.hbm_to_vmem [thread:$0]  %s20, 1024, %s22, [#allocation3], 64, 64, 4
    $region5: #{tpu_custom_call.1} parent=1 // pred_fallthru
      _
    // Predicated region
    $region6: #{tpu_custom_call.1} parent=1 // pred_check
      _
    $region7: #{tpu_custom_call.1} parent=1 // pred_check_branch
      %29 = sbr.rel (0) target = $region9
    $region8: #{tpu_custom_call.1} parent=1 // pred_region
      %31 = vsyncadd [#allocation6], 0
      %s32 = sshll.u32 %s1, 4
      %s33 = int_to_ptr.hbm [resolvable:$true] %s32
      %s34 = sshll.u32 [#allocation5], 4
      %s35 = int_to_ptr.vmem [resolvable:$true] %s34
      %40 = dma.hbm_to_vmem [thread:$0]  %s33, 1024, %s35, [#allocation6], 64, 64, 4
    $region9: #{tpu_custom_call.1} parent=1 // pred_fallthru
      _
    // Predicated region
    $region10: #{tpu_custom_call.1} parent=1 // pred_check
      _
    $region11: #{tpu_custom_call.1} parent=1 // pred_check_branch
      %42 = sbr.rel (0) target = $region13
    $region12: #{tpu_custom_call.1} parent=1 // pred_region
      _
    $region13: #{tpu_custom_call.1} parent=1 // pred_fallthru
      _
    // Predicated region
    $region14: #{tpu_custom_call.1} parent=1 // pred_check
      _
    $region15: #{tpu_custom_call.1} parent=1 // pred_check_branch
      %44 = sbr.rel (0) target = $region17
    $region16: #{tpu_custom_call.1} parent=1 // pred_region
      %46 = vsyncadd [#allocation6], 0
      %s47 = sshll.u32 %s3, 4
      %s48 = int_to_ptr.hbm [resolvable:$true] %s47
      %s49 = sshll.u32 [#allocation7], 4
      %s50 = int_to_ptr.vmem [resolvable:$true] %s49
      %55 = dma.hbm_to_vmem [thread:$0]  %s48, 1024, %s50, [#allocation6], 64, 64, 4
    $region17: #{tpu_custom_call.1} parent=1 // pred_fallthru
      _
    // Predicated region
    $region18: #{tpu_custom_call.1} parent=1 // pred_check
      _
    $region19: #{tpu_custom_call.1} parent=1 // pred_check_branch
      %57 = sbr.rel (0) target = $region21
    $region20: #{tpu_custom_call.1} parent=1 // pred_region
      _
    $region21: #{tpu_custom_call.1} parent=1 // pred_fallthru
      _
    // Predicated region
    $region22: #{tpu_custom_call.1} parent=1 // pred_check
      _
    $region23: #{tpu_custom_call.1} parent=1 // pred_check_branch
      %59 = sbr.rel (0) target = $region25
    $region24: #{tpu_custom_call.1} parent=1 // pred_region
      %61 = vsyncadd [#allocation9], 0
      %s62 = sshll.u32 %s5, 4
      %s63 = int_to_ptr.hbm [resolvable:$true] %s62
      %s64 = sshll.u32 [#allocation8], 4
      %s65 = int_to_ptr.vmem [resolvable:$true] %s64
      %70 = dma.hbm_to_vmem [thread:$0]  %s63, 1024, %s65, [#allocation9], 64, 64, 4
    $region25: #{tpu_custom_call.1} parent=1 // pred_fallthru
      _
    // Predicated region
    $region26: #{tpu_custom_call.1} parent=1 // pred_check
      _
    $region27: #{tpu_custom_call.1} parent=1 // pred_check_branch
      %72 = sbr.rel (0) target = $region29
    $region28: #{tpu_custom_call.1} parent=1 // pred_region
      %74 = dma.done [#allocation3], 1024
    $region29: #{tpu_custom_call.1} parent=1 // pred_fallthru
      _
    // Predicated region
    $region30: #{tpu_custom_call.1} parent=1 // pred_check
      _
    $region31: #{tpu_custom_call.1} parent=1 // pred_check_branch
      %76 = sbr.rel (0) target = $region33
    $region32: #{tpu_custom_call.1} parent=1 // pred_region
      %78 = dma.done [#allocation6], 1024
    $region33: #{tpu_custom_call.1} parent=1 // pred_fallthru
      _
    // Predicated region
    $region34: #{tpu_custom_call.1} parent=1 // pred_check
      _
    $region35: #{tpu_custom_call.1} parent=1 // pred_check_branch
      %80 = sbr.rel (0) target = $region37
    $region36: #{tpu_custom_call.1} parent=1 // pred_region
      %82 = dma.done [#allocation6], 1024
    $region37: #{tpu_custom_call.1} parent=1 // pred_fallthru
      _
    // Predicated region
    $region38: #{tpu_custom_call.1} parent=1 // pred_check
      _
    $region39: #{tpu_custom_call.1} parent=1 // pred_check_branch
      %84 = sbr.rel (0) target = $region41
    $region40: #{tpu_custom_call.1} parent=1 // pred_region
      %86 = dma.done [#allocation9], 1024
    $region41: #{tpu_custom_call.1} parent=1 // pred_fallthru
      _
    %v87 = vld [vmem:[#allocation8] sm:$0xf]
    %v88 = vld [vmem:[#allocation8 + $0x4] sm:$0xf]
    %v89 = vld [vmem:[#allocation8 + $0x8] sm:$0xf]
    %v90 = vld [vmem:[#allocation8 + $0xc] sm:$0xf]
    %v91 = vld [vmem:[#allocation8 + $0x10] sm:$0xf]
    %v92 = vld [vmem:[#allocation8 + $0x14] sm:$0xf]
    %v93 = vld [vmem:[#allocation8 + $0x18] sm:$0xf]
    %v94 = vld [vmem:[#allocation8 + $0x1c] sm:$0xf]
    %v95 = vld [vmem:[#allocation8 + $0x20] sm:$0xf]
    %v96 = vld [vmem:[#allocation8 + $0x24] sm:$0xf]
    %v97 = vld [vmem:[#allocation8 + $0x28] sm:$0xf]
    %v98 = vld [vmem:[#allocation8 + $0x2c] sm:$0xf]
    %v99 = vld [vmem:[#allocation8 + $0x30] sm:$0xf]
    %v100 = vld [vmem:[#allocation8 + $0x34] sm:$0xf]
    %v101 = vld [vmem:[#allocation8 + $0x38] sm:$0xf]
    %v102 = vld [vmem:[#allocation8 + $0x3c] sm:$0xf]
    %v103 = vld [vmem:[#allocation2] sm:$0xf]
    %v104 = vld [vmem:[#allocation2 + $0x4] sm:$0xf]
    %v105 = vld [vmem:[#allocation2 + $0x8] sm:$0xf]
    %v106 = vld [vmem:[#allocation2 + $0xc] sm:$0xf]
    %v107 = vld [vmem:[#allocation2 + $0x10] sm:$0xf]
    %v108 = vld [vmem:[#allocation2 + $0x14] sm:$0xf]
    %v109 = vld [vmem:[#allocation2 + $0x18] sm:$0xf]
    %v110 = vld [vmem:[#allocation2 + $0x1c] sm:$0xf]
    %v111 = vld [vmem:[#allocation2 + $0x20] sm:$0xf]
    %v112 = vld [vmem:[#allocation2 + $0x24] sm:$0xf]
    %v113 = vld [vmem:[#allocation2 + $0x28] sm:$0xf]
    %v114 = vld [vmem:[#allocation2 + $0x2c] sm:$0xf]
    %v115 = vld [vmem:[#allocation2 + $0x30] sm:$0xf]
    %v116 = vld [vmem:[#allocation2 + $0x34] sm:$0xf]
    %v117 = vld [vmem:[#allocation2 + $0x38] sm:$0xf]
    %v118 = vld [vmem:[#allocation2 + $0x3c] sm:$0xf]
    %v119 = vld [vmem:[#allocation5] sm:$0xf]
    %v120 = vld [vmem:[#allocation5 + $0x4] sm:$0xf]
    %v121 = vld [vmem:[#allocation5 + $0x8] sm:$0xf]
    %v122 = vld [vmem:[#allocation5 + $0xc] sm:$0xf]
    %v123 = vld [vmem:[#allocation5 + $0x10] sm:$0xf]
    %v124 = vld [vmem:[#allocation5 + $0x14] sm:$0xf]
    %v125 = vld [vmem:[#allocation5 + $0x18] sm:$0xf]
    %v126 = vld [vmem:[#allocation5 + $0x1c] sm:$0xf]
    %v127 = vld [vmem:[#allocation5 + $0x20] sm:$0xf]
    %v128 = vld [vmem:[#allocation5 + $0x24] sm:$0xf]
    %v129 = vld [vmem:[#allocation5 + $0x28] sm:$0xf]
    %v130 = vld [vmem:[#allocation5 + $0x2c] sm:$0xf]
    %v131 = vld [vmem:[#allocation5 + $0x30] sm:$0xf]
    %v132 = vld [vmem:[#allocation5 + $0x34] sm:$0xf]
    %v133 = vld [vmem:[#allocation5 + $0x38] sm:$0xf]
    %v134 = vld [vmem:[#allocation5 + $0x3c] sm:$0xf]
    %v151 = vunpack.c.l.b16 %v103
    %v152 = vunpack.c.l.b16 %v104
    %v153 = vunpack.c.l.b16 %v105
    %v154 = vunpack.c.l.b16 %v106
    %v155 = vunpack.c.l.b16 %v107
    %v156 = vunpack.c.l.b16 %v108
    %v157 = vunpack.c.l.b16 %v109
    %v158 = vunpack.c.l.b16 %v110
    %v159 = vunpack.c.l.b16 %v111
    %v160 = vunpack.c.l.b16 %v112
    %v161 = vunpack.c.l.b16 %v113
    %v162 = vunpack.c.l.b16 %v114
    %v163 = vunpack.c.l.b16 %v115
    %v164 = vunpack.c.l.b16 %v116
    %v165 = vunpack.c.l.b16 %v117
    %v166 = vunpack.c.l.b16 %v118
    %v167 = vpack.c.b16 %v152, %v151
    %v168 = vpack.c.b16 %v154, %v153
    %v169 = vpack.c.b16 %v156, %v155
    %v170 = vpack.c.b16 %v158, %v157
    %v171 = vpack.c.b16 %v160, %v159
    %v172 = vpack.c.b16 %v162, %v161
    %v173 = vpack.c.b16 %v164, %v163
    %v174 = vpack.c.b16 %v166, %v165
    %v199 = vunpack.c.l.b16 %v119
    %v200 = vunpack.c.l.b16 %v120
    %v201 = vunpack.c.l.b16 %v121
    %v202 = vunpack.c.l.b16 %v122
    %v203 = vunpack.c.l.b16 %v123
    %v204 = vunpack.c.l.b16 %v124
    %v205 = vunpack.c.l.b16 %v125
    %v206 = vunpack.c.l.b16 %v126
    %v207 = vunpack.c.l.b16 %v127
    %v208 = vunpack.c.l.b16 %v128
    %v209 = vunpack.c.l.b16 %v129
    %v210 = vunpack.c.l.b16 %v130
    %v211 = vunpack.c.l.b16 %v131
    %v212 = vunpack.c.l.b16 %v132
    %v213 = vunpack.c.l.b16 %v133
    %v214 = vunpack.c.l.b16 %v134
    %v215 = vpack.c.b16 %v200, %v199
    %v216 = vpack.c.b16 %v202, %v201
    %v217 = vpack.c.b16 %v204, %v203
    %v218 = vpack.c.b16 %v206, %v205
    %v219 = vpack.c.b16 %v208, %v207
    %v220 = vpack.c.b16 %v210, %v209
    %v221 = vpack.c.b16 %v212, %v211
    %v222 = vpack.c.b16 %v214, %v213
    %231 = vmatpush.bf16.msra.mxu0 %v222
    %232 = vmatpush.bf16.msra.mxu0 %v221
    %233 = vmatpush.bf16.msra.mxu0 %v220
    %234 = vmatpush.bf16.msra.mxu0 %v219
    %235 = vmatpush.bf16.msra.mxu0 %v218
    %236 = vmatpush.bf16.msra.mxu0 %v217
    %237 = vmatpush.bf16.msra.mxu0 %v216
    %238 = vmatpush.bf16.msra.mxu0 %v215
    %239 = vmatmul.bf16.gmra.mxu0 %v167
    %v240 = vpop.f32.mrf.mxu0
    %v241 = vadd.f32 0.0, %v240
    %v242 = vpop.f32.mrf.mxu0
    %v243 = vadd.f32 0.0, %v242
    %244 = vmatmul.bf16.gmra.mxu0 %v168
    %v245 = vpop.f32.mrf.mxu0
    %v246 = vadd.f32 0.0, %v245
    %v247 = vpop.f32.mrf.mxu0
    %v248 = vadd.f32 0.0, %v247
    %249 = vmatmul.bf16.gmra.mxu0 %v169
    %v250 = vpop.f32.mrf.mxu0
    %v251 = vadd.f32 0.0, %v250
    %v252 = vpop.f32.mrf.mxu0
    %v253 = vadd.f32 0.0, %v252
    %254 = vmatmul.bf16.gmra.mxu0 %v170
    %v255 = vpop.f32.mrf.mxu0
    %v256 = vadd.f32 0.0, %v255
    %v257 = vpop.f32.mrf.mxu0
    %v258 = vadd.f32 0.0, %v257
    %259 = vmatmul.bf16.gmra.mxu0 %v171
    %v260 = vpop.f32.mrf.mxu0
    %v261 = vadd.f32 0.0, %v260
    %v262 = vpop.f32.mrf.mxu0
    %v263 = vadd.f32 0.0, %v262
    %264 = vmatmul.bf16.gmra.mxu0 %v172
    %v265 = vpop.f32.mrf.mxu0
    %v266 = vadd.f32 0.0, %v265
    %v267 = vpop.f32.mrf.mxu0
    %v268 = vadd.f32 0.0, %v267
    %269 = vmatmul.bf16.gmra.mxu0 %v173
    %v270 = vpop.f32.mrf.mxu0
    %v271 = vadd.f32 0.0, %v270
    %v272 = vpop.f32.mrf.mxu0
    %v273 = vadd.f32 0.0, %v272
    %274 = vmatmul.bf16.gmra.mxu0 %v174
    %v275 = vpop.f32.mrf.mxu0
    %v276 = vadd.f32 0.0, %v275
    %v277 = vpop.f32.mrf.mxu0
    %v278 = vadd.f32 0.0, %v277
    %279 = vdwg.mxu0
    %v280 = vpack.c.bf16 %v243, %v241
    %v281 = vpack.c.bf16 %v248, %v246
    %v282 = vpack.c.bf16 %v253, %v251
    %v283 = vpack.c.bf16 %v258, %v256
    %v284 = vpack.c.bf16 %v263, %v261
    %v285 = vpack.c.bf16 %v268, %v266
    %v286 = vpack.c.bf16 %v273, %v271
    %v287 = vpack.c.bf16 %v278, %v276
    %v288 = vld [vmem:[%s2] sm:$0x1]
    %v290 = vperm.slane %v288, 0
    %v308 = vunpack.c.l.b16 %v87
    %v309 = vunpack.c.l.b16 %v88
    %v310 = vunpack.c.l.b16 %v89
    %v311 = vunpack.c.l.b16 %v90
    %v312 = vunpack.c.l.b16 %v91
    %v313 = vunpack.c.l.b16 %v92
    %v314 = vunpack.c.l.b16 %v93
    %v315 = vunpack.c.l.b16 %v94
    %v316 = vunpack.c.l.b16 %v95
    %v317 = vunpack.c.l.b16 %v96
    %v318 = vunpack.c.l.b16 %v97
    %v319 = vunpack.c.l.b16 %v98
    %v320 = vunpack.c.l.b16 %v99
    %v321 = vunpack.c.l.b16 %v100
    %v322 = vunpack.c.l.b16 %v101
    %v323 = vunpack.c.l.b16 %v102
    %v324 = vpack.c.b16 %v309, %v308
    %v325 = vpack.c.b16 %v311, %v310
    %v326 = vpack.c.b16 %v313, %v312
    %v327 = vpack.c.b16 %v315, %v314
    %v328 = vpack.c.b16 %v317, %v316
    %v329 = vpack.c.b16 %v319, %v318
    %v330 = vpack.c.b16 %v321, %v320
    %v331 = vpack.c.b16 %v323, %v322
    %340 = vmatpush.bf16.msra.mxu0 %v287
    %341 = vmatpush.bf16.msra.mxu0 %v286
    %342 = vmatpush.bf16.msra.mxu0 %v285
    %343 = vmatpush.bf16.msra.mxu0 %v284
    %344 = vmatpush.bf16.msra.mxu0 %v283
    %345 = vmatpush.bf16.msra.mxu0 %v282
    %346 = vmatpush.bf16.msra.mxu0 %v281
    %347 = vmatpush.bf16.msra.mxu0 %v280
    %348 = vmatmul.bf16.gmra.mxu0 %v324
    %v349 = vpop.f32.mrf.mxu0
    %v350 = vadd.f32 %v290, %v349
    %v351 = vpop.f32.mrf.mxu0
    %v352 = vadd.f32 %v290, %v351
    %353 = vmatmul.bf16.gmra.mxu0 %v325
    %v354 = vpop.f32.mrf.mxu0
    %v355 = vadd.f32 %v290, %v354
    %v356 = vpop.f32.mrf.mxu0
    %v357 = vadd.f32 %v290, %v356
    %358 = vmatmul.bf16.gmra.mxu0 %v326
    %v359 = vpop.f32.mrf.mxu0
    %v360 = vadd.f32 %v290, %v359
    %v361 = vpop.f32.mrf.mxu0
    %v362 = vadd.f32 %v290, %v361
    %363 = vmatmul.bf16.gmra.mxu0 %v327
    %v364 = vpop.f32.mrf.mxu0
    %v365 = vadd.f32 %v290, %v364
    %v366 = vpop.f32.mrf.mxu0
    %v367 = vadd.f32 %v290, %v366
    %368 = vmatmul.bf16.gmra.mxu0 %v328
    %v369 = vpop.f32.mrf.mxu0
    %v370 = vadd.f32 %v290, %v369
    %v371 = vpop.f32.mrf.mxu0
    %v372 = vadd.f32 %v290, %v371
    %373 = vmatmul.bf16.gmra.mxu0 %v329
    %v374 = vpop.f32.mrf.mxu0
    %v375 = vadd.f32 %v290, %v374
    %v376 = vpop.f32.mrf.mxu0
    %v377 = vadd.f32 %v290, %v376
    %378 = vmatmul.bf16.gmra.mxu0 %v330
    %v379 = vpop.f32.mrf.mxu0
    %v380 = vadd.f32 %v290, %v379
    %v381 = vpop.f32.mrf.mxu0
    %v382 = vadd.f32 %v290, %v381
    %383 = vmatmul.bf16.gmra.mxu0 %v331
    %v384 = vpop.f32.mrf.mxu0
    %v385 = vadd.f32 %v290, %v384
    %v386 = vpop.f32.mrf.mxu0
    %v387 = vadd.f32 %v290, %v386
    %388 = vdwg.mxu0
    %v389 = vmax.f32 %v350, 0.0
    %v390 = vmax.f32 %v352, 0.0
    %v391 = vmax.f32 %v355, 0.0
    %v392 = vmax.f32 %v357, 0.0
    %v393 = vmax.f32 %v360, 0.0
    %v394 = vmax.f32 %v362, 0.0
    %v395 = vmax.f32 %v365, 0.0
    %v396 = vmax.f32 %v367, 0.0
    %v397 = vmax.f32 %v370, 0.0
    %v398 = vmax.f32 %v372, 0.0
    %v399 = vmax.f32 %v375, 0.0
    %v400 = vmax.f32 %v377, 0.0
    %v401 = vmax.f32 %v380, 0.0
    %v402 = vmax.f32 %v382, 0.0
    %v403 = vmax.f32 %v385, 0.0
    %v404 = vmax.f32 %v387, 0.0
    %v405 = vpack.c.bf16 %v390, %v389
    %v406 = vpack.c.bf16 %v392, %v391
    %v407 = vpack.c.bf16 %v394, %v393
    %v408 = vpack.c.bf16 %v396, %v395
    %v409 = vpack.c.bf16 %v398, %v397
    %v410 = vpack.c.bf16 %v400, %v399
    %v411 = vpack.c.bf16 %v402, %v401
    %v412 = vpack.c.bf16 %v404, %v403
    %v413 = vld [vmem:[#allocation7] sm:$0xf]
    %v414 = vld [vmem:[#allocation7 + $0x4] sm:$0xf]
    %v415 = vld [vmem:[#allocation7 + $0x8] sm:$0xf]
    %v416 = vld [vmem:[#allocation7 + $0xc] sm:$0xf]
    %v417 = vld [vmem:[#allocation7 + $0x10] sm:$0xf]
    %v418 = vld [vmem:[#allocation7 + $0x14] sm:$0xf]
    %v419 = vld [vmem:[#allocation7 + $0x18] sm:$0xf]
    %v420 = vld [vmem:[#allocation7 + $0x1c] sm:$0xf]
    %v421 = vld [vmem:[#allocation7 + $0x20] sm:$0xf]
    %v422 = vld [vmem:[#allocation7 + $0x24] sm:$0xf]
    %v423 = vld [vmem:[#allocation7 + $0x28] sm:$0xf]
    %v424 = vld [vmem:[#allocation7 + $0x2c] sm:$0xf]
    %v425 = vld [vmem:[#allocation7 + $0x30] sm:$0xf]
    %v426 = vld [vmem:[#allocation7 + $0x34] sm:$0xf]
    %v427 = vld [vmem:[#allocation7 + $0x38] sm:$0xf]
    %v428 = vld [vmem:[#allocation7 + $0x3c] sm:$0xf]
    %v445 = vunpack.c.l.b16 %v413
    %v446 = vunpack.c.l.b16 %v414
    %v447 = vunpack.c.l.b16 %v415
    %v448 = vunpack.c.l.b16 %v416
    %v449 = vunpack.c.l.b16 %v417
    %v450 = vunpack.c.l.b16 %v418
    %v451 = vunpack.c.l.b16 %v419
    %v452 = vunpack.c.l.b16 %v420
    %v453 = vunpack.c.l.b16 %v421
    %v454 = vunpack.c.l.b16 %v422
    %v455 = vunpack.c.l.b16 %v423
    %v456 = vunpack.c.l.b16 %v424
    %v457 = vunpack.c.l.b16 %v425
    %v458 = vunpack.c.l.b16 %v426
    %v459 = vunpack.c.l.b16 %v427
    %v460 = vunpack.c.l.b16 %v428
    %v461 = vpack.c.b16 %v446, %v445
    %v462 = vpack.c.b16 %v448, %v447
    %v463 = vpack.c.b16 %v450, %v449
    %v464 = vpack.c.b16 %v452, %v451
    %v465 = vpack.c.b16 %v454, %v453
    %v466 = vpack.c.b16 %v456, %v455
    %v467 = vpack.c.b16 %v458, %v457
    %v468 = vpack.c.b16 %v460, %v459
    %477 = vmatpush.bf16.msra.mxu0 %v468
    %478 = vmatpush.bf16.msra.mxu0 %v467
    %479 = vmatpush.bf16.msra.mxu0 %v466
    %480 = vmatpush.bf16.msra.mxu0 %v465
    %481 = vmatpush.bf16.msra.mxu0 %v464
    %482 = vmatpush.bf16.msra.mxu0 %v463
    %483 = vmatpush.bf16.msra.mxu0 %v462
    %484 = vmatpush.bf16.msra.mxu0 %v461
    %485 = vmatmul.bf16.gmra.mxu0 %v405
    %v486 = vpop.f32.mrf.mxu0
    %v487 = vadd.f32 0.0, %v486
    %v488 = vpop.f32.mrf.mxu0
    %v489 = vadd.f32 0.0, %v488
    %490 = vmatmul.bf16.gmra.mxu0 %v406
    %v491 = vpop.f32.mrf.mxu0
    %v492 = vadd.f32 0.0, %v491
    %v493 = vpop.f32.mrf.mxu0
    %v494 = vadd.f32 0.0, %v493
    %495 = vmatmul.bf16.gmra.mxu0 %v407
    %v496 = vpop.f32.mrf.mxu0
    %v497 = vadd.f32 0.0, %v496
    %v498 = vpop.f32.mrf.mxu0
    %v499 = vadd.f32 0.0, %v498
    %500 = vmatmul.bf16.gmra.mxu0 %v408
    %v501 = vpop.f32.mrf.mxu0
    %v502 = vadd.f32 0.0, %v501
    %v503 = vpop.f32.mrf.mxu0
    %v504 = vadd.f32 0.0, %v503
    %505 = vmatmul.bf16.gmra.mxu0 %v409
    %v506 = vpop.f32.mrf.mxu0
    %v507 = vadd.f32 0.0, %v506
    %v508 = vpop.f32.mrf.mxu0
    %v509 = vadd.f32 0.0, %v508
    %510 = vmatmul.bf16.gmra.mxu0 %v410
    %v511 = vpop.f32.mrf.mxu0
    %v512 = vadd.f32 0.0, %v511
    %v513 = vpop.f32.mrf.mxu0
    %v514 = vadd.f32 0.0, %v513
    %515 = vmatmul.bf16.gmra.mxu0 %v411
    %v516 = vpop.f32.mrf.mxu0
    %v517 = vadd.f32 0.0, %v516
    %v518 = vpop.f32.mrf.mxu0
    %v519 = vadd.f32 0.0, %v518
    %520 = vmatmul.bf16.gmra.mxu0 %v412
    %v521 = vpop.f32.mrf.mxu0
    %v522 = vadd.f32 0.0, %v521
    %v523 = vpop.f32.mrf.mxu0
    %v524 = vadd.f32 0.0, %v523
    %525 = vdwg.mxu0
    %v526 = vpack.c.bf16 %v489, %v487
    %v527 = vpack.c.bf16 %v494, %v492
    %v528 = vpack.c.bf16 %v499, %v497
    %v529 = vpack.c.bf16 %v504, %v502
    %v530 = vpack.c.bf16 %v509, %v507
    %v531 = vpack.c.bf16 %v514, %v512
    %v532 = vpack.c.bf16 %v519, %v517
    %v533 = vpack.c.bf16 %v524, %v522
    %v534 = vld [vmem:[%s4] sm:$0x1]
    %v536 = vperm.slane %v534, 0
    %538 = vmatpush.bf16.msra.mxu0 %v533
    %539 = vmatpush.bf16.msra.mxu0 %v532
    %540 = vmatpush.bf16.msra.mxu0 %v531
    %541 = vmatpush.bf16.msra.mxu0 %v530
    %542 = vmatpush.bf16.msra.mxu0 %v529
    %543 = vmatpush.bf16.msra.mxu0 %v528
    %544 = vmatpush.bf16.msra.mxu0 %v527
    %545 = vmatpush.bf16.msra.mxu0 %v526
    %546 = vmatmul.bf16.gmra.mxu0 %v324
    %v547 = vpop.f32.mrf.mxu0
    %v548 = vadd.f32 %v536, %v547
    %v549 = vpop.f32.mrf.mxu0
    %v550 = vadd.f32 %v536, %v549
    %551 = vmatmul.bf16.gmra.mxu0 %v325
    %v552 = vpop.f32.mrf.mxu0
    %v553 = vadd.f32 %v536, %v552
    %v554 = vpop.f32.mrf.mxu0
    %v555 = vadd.f32 %v536, %v554
    %556 = vmatmul.bf16.gmra.mxu0 %v326
    %v557 = vpop.f32.mrf.mxu0
    %v558 = vadd.f32 %v536, %v557
    %v559 = vpop.f32.mrf.mxu0
    %v560 = vadd.f32 %v536, %v559
    %561 = vmatmul.bf16.gmra.mxu0 %v327
    %v562 = vpop.f32.mrf.mxu0
    %v563 = vadd.f32 %v536, %v562
    %v564 = vpop.f32.mrf.mxu0
    %v565 = vadd.f32 %v536, %v564
    %566 = vmatmul.bf16.gmra.mxu0 %v328
    %v567 = vpop.f32.mrf.mxu0
    %v568 = vadd.f32 %v536, %v567
    %v569 = vpop.f32.mrf.mxu0
    %v570 = vadd.f32 %v536, %v569
    %571 = vmatmul.bf16.gmra.mxu0 %v329
    %v572 = vpop.f32.mrf.mxu0
    %v573 = vadd.f32 %v536, %v572
    %v574 = vpop.f32.mrf.mxu0
    %v575 = vadd.f32 %v536, %v574
    %576 = vmatmul.bf16.gmra.mxu0 %v330
    %v577 = vpop.f32.mrf.mxu0
    %v578 = vadd.f32 %v536, %v577
    %v579 = vpop.f32.mrf.mxu0
    %v580 = vadd.f32 %v536, %v579
    %581 = vmatmul.bf16.gmra.mxu0 %v331
    %v582 = vpop.f32.mrf.mxu0
    %v583 = vadd.f32 %v536, %v582
    %v584 = vpop.f32.mrf.mxu0
    %v585 = vadd.f32 %v536, %v584
    %586 = vdwg.mxu0
    %587 = vmax.xlane.f32.xlu0 %v548
    %v588 = vpop.xlane.xlu0 %587
    %589 = vmax.xlane.f32.xlu0 %v550
    %v590 = vpop.xlane.xlu0 %589
    %591 = vmax.xlane.f32.xlu0 %v553
    %v592 = vpop.xlane.xlu0 %591
    %593 = vmax.xlane.f32.xlu0 %v555
    %v594 = vpop.xlane.xlu0 %593
    %595 = vmax.xlane.f32.xlu0 %v558
    %v596 = vpop.xlane.xlu0 %595
    %597 = vmax.xlane.f32.xlu0 %v560
    %v598 = vpop.xlane.xlu0 %597
    %599 = vmax.xlane.f32.xlu0 %v563
    %v600 = vpop.xlane.xlu0 %599
    %601 = vmax.xlane.f32.xlu0 %v565
    %v602 = vpop.xlane.xlu0 %601
    %603 = vmax.xlane.f32.xlu0 %v568
    %v604 = vpop.xlane.xlu0 %603
    %605 = vmax.xlane.f32.xlu0 %v570
    %v606 = vpop.xlane.xlu0 %605
    %607 = vmax.xlane.f32.xlu0 %v573
    %v608 = vpop.xlane.xlu0 %607
    %609 = vmax.xlane.f32.xlu0 %v575
    %v610 = vpop.xlane.xlu0 %609
    %611 = vmax.xlane.f32.xlu0 %v578
    %v612 = vpop.xlane.xlu0 %611
    %613 = vmax.xlane.f32.xlu0 %v580
    %v614 = vpop.xlane.xlu0 %613
    %615 = vmax.xlane.f32.xlu0 %v583
    %v616 = vpop.xlane.xlu0 %615
    %617 = vmax.xlane.f32.xlu0 %v585
    %v618 = vpop.xlane.xlu0 %617
    %v619 = vsub.f32 %v548, %v588
    %v620 = vsub.f32 %v550, %v590
    %v621 = vsub.f32 %v553, %v592
    %v622 = vsub.f32 %v555, %v594
    %v623 = vsub.f32 %v558, %v596
    %v624 = vsub.f32 %v560, %v598
    %v625 = vsub.f32 %v563, %v600
    %v626 = vsub.f32 %v565, %v602
    %v627 = vsub.f32 %v568, %v604
    %v628 = vsub.f32 %v570, %v606
    %v629 = vsub.f32 %v573, %v608
    %v630 = vsub.f32 %v575, %v610
    %v631 = vsub.f32 %v578, %v612
    %v632 = vsub.f32 %v580, %v614
    %v633 = vsub.f32 %v583, %v616
    %v634 = vsub.f32 %v585, %v618
    %v635 = vmul.f32 %v619, 1.442695
    %v636 = vpow.pop %v635
    %v637 = vmul.f32 %v620, 1.442695
    %v638 = vpow.pop %v637
    %v639 = vmul.f32 %v621, 1.442695
    %v640 = vpow.pop %v639
    %v641 = vmul.f32 %v622, 1.442695
    %v642 = vpow.pop %v641
    %v643 = vmul.f32 %v623, 1.442695
    %v644 = vpow.pop %v643
    %v645 = vmul.f32 %v624, 1.442695
    %v646 = vpow.pop %v645
    %v647 = vmul.f32 %v625, 1.442695
    %v648 = vpow.pop %v647
    %v649 = vmul.f32 %v626, 1.442695
    %v650 = vpow.pop %v649
    %v651 = vmul.f32 %v627, 1.442695
    %v652 = vpow.pop %v651
    %v653 = vmul.f32 %v628, 1.442695
    %v654 = vpow.pop %v653
    %v655 = vmul.f32 %v629, 1.442695
    %v656 = vpow.pop %v655
    %v657 = vmul.f32 %v630, 1.442695
    %v658 = vpow.pop %v657
    %v659 = vmul.f32 %v631, 1.442695
    %v660 = vpow.pop %v659
    %v661 = vmul.f32 %v632, 1.442695
    %v662 = vpow.pop %v661
    %v663 = vmul.f32 %v633, 1.442695
    %v664 = vpow.pop %v663
    %v665 = vmul.f32 %v634, 1.442695
    %v666 = vpow.pop %v665
    %667 = vadd.xlane.f32.xlu0 %v636
    %v668 = vpop.xlane.xlu0 %667
    %669 = vadd.xlane.f32.xlu0 %v638
    %v670 = vpop.xlane.xlu0 %669
    %671 = vadd.xlane.f32.xlu0 %v640
    %v672 = vpop.xlane.xlu0 %671
    %673 = vadd.xlane.f32.xlu0 %v642
    %v674 = vpop.xlane.xlu0 %673
    %675 = vadd.xlane.f32.xlu0 %v644
    %v676 = vpop.xlane.xlu0 %675
    %677 = vadd.xlane.f32.xlu0 %v646
    %v678 = vpop.xlane.xlu0 %677
    %679 = vadd.xlane.f32.xlu0 %v648
    %v680 = vpop.xlane.xlu0 %679
    %681 = vadd.xlane.f32.xlu0 %v650
    %v682 = vpop.xlane.xlu0 %681
    %683 = vadd.xlane.f32.xlu0 %v652
    %v684 = vpop.xlane.xlu0 %683
    %685 = vadd.xlane.f32.xlu0 %v654
    %v686 = vpop.xlane.xlu0 %685
    %687 = vadd.xlane.f32.xlu0 %v656
    %v688 = vpop.xlane.xlu0 %687
    %689 = vadd.xlane.f32.xlu0 %v658
    %v690 = vpop.xlane.xlu0 %689
    %691 = vadd.xlane.f32.xlu0 %v660
    %v692 = vpop.xlane.xlu0 %691
    %693 = vadd.xlane.f32.xlu0 %v662
    %v694 = vpop.xlane.xlu0 %693
    %695 = vadd.xlane.f32.xlu0 %v664
    %v696 = vpop.xlane.xlu0 %695
    %697 = vadd.xlane.f32.xlu0 %v666
    %v698 = vpop.xlane.xlu0 %697
    %v699 = vlog2.pop %v668
    %v700 = vmul.f32 %v699, 0.6931472
    %v701 = vlog2.pop %v670
    %v702 = vmul.f32 %v701, 0.6931472
    %v703 = vlog2.pop %v672
    %v704 = vmul.f32 %v703, 0.6931472
    %v705 = vlog2.pop %v674
    %v706 = vmul.f32 %v705, 0.6931472
    %v707 = vlog2.pop %v676
    %v708 = vmul.f32 %v707, 0.6931472
    %v709 = vlog2.pop %v678
    %v710 = vmul.f32 %v709, 0.6931472
    %v711 = vlog2.pop %v680
    %v712 = vmul.f32 %v711, 0.6931472
    %v713 = vlog2.pop %v682
    %v714 = vmul.f32 %v713, 0.6931472
    %v715 = vlog2.pop %v684
    %v716 = vmul.f32 %v715, 0.6931472
    %v717 = vlog2.pop %v686
    %v718 = vmul.f32 %v717, 0.6931472
    %v719 = vlog2.pop %v688
    %v720 = vmul.f32 %v719, 0.6931472
    %v721 = vlog2.pop %v690
    %v722 = vmul.f32 %v721, 0.6931472
    %v723 = vlog2.pop %v692
    %v724 = vmul.f32 %v723, 0.6931472
    %v725 = vlog2.pop %v694
    %v726 = vmul.f32 %v725, 0.6931472
    %v727 = vlog2.pop %v696
    %v728 = vmul.f32 %v727, 0.6931472
    %v729 = vlog2.pop %v698
    %v730 = vmul.f32 %v729, 0.6931472
    %v731 = vsub.f32 %v619, %v700
    %v732 = vsub.f32 %v620, %v702
    %v733 = vsub.f32 %v621, %v704
    %v734 = vsub.f32 %v622, %v706
    %v735 = vsub.f32 %v623, %v708
    %v736 = vsub.f32 %v624, %v710
    %v737 = vsub.f32 %v625, %v712
    %v738 = vsub.f32 %v626, %v714
    %v739 = vsub.f32 %v627, %v716
    %v740 = vsub.f32 %v628, %v718
    %v741 = vsub.f32 %v629, %v720
    %v742 = vsub.f32 %v630, %v722
    %v743 = vsub.f32 %v631, %v724
    %v744 = vsub.f32 %v632, %v726
    %v745 = vsub.f32 %v633, %v728
    %v746 = vsub.f32 %v634, %v730
    %747 = vst [vmem:[#allocation10] sm:$0xff] %v731
    %748 = vst [vmem:[#allocation10 + $0x8] sm:$0xff] %v732
    %749 = vst [vmem:[#allocation10 + $0x10] sm:$0xff] %v733
    %750 = vst [vmem:[#allocation10 + $0x18] sm:$0xff] %v734
    %751 = vst [vmem:[#allocation10 + $0x20] sm:$0xff] %v735
    %752 = vst [vmem:[#allocation10 + $0x28] sm:$0xff] %v736
    %753 = vst [vmem:[#allocation10 + $0x30] sm:$0xff] %v737
    %754 = vst [vmem:[#allocation10 + $0x38] sm:$0xff] %v738
    %755 = vst [vmem:[#allocation10 + $0x40] sm:$0xff] %v739
    %756 = vst [vmem:[#allocation10 + $0x48] sm:$0xff] %v740
    %757 = vst [vmem:[#allocation10 + $0x50] sm:$0xff] %v741
    %758 = vst [vmem:[#allocation10 + $0x58] sm:$0xff] %v742
    %759 = vst [vmem:[#allocation10 + $0x60] sm:$0xff] %v743
    %760 = vst [vmem:[#allocation10 + $0x68] sm:$0xff] %v744
    %761 = vst [vmem:[#allocation10 + $0x70] sm:$0xff] %v745
    %762 = vst [vmem:[#allocation10 + $0x78] sm:$0xff] %v746
    // Predicated region
    $region42: #{tpu_custom_call.1} parent=1 // pred_check
      _
    $region43: #{tpu_custom_call.1} parent=1 // pred_check_branch
      %764 = sbr.rel (0) target = $region45
    $region44: #{tpu_custom_call.1} parent=1 // pred_region
      %766 = vsyncadd [#allocation4], 0
      %s767 = sshll.u32 [#allocation10], 4
      %s768 = int_to_ptr.vmem [resolvable:$true] %s767
      %s769 = sshll.u32 %s6, 4
      %s770 = int_to_ptr.hbm [resolvable:$true] %s769
      %775 = dma.vmem_to_hbm [thread:$0]  %s768, 2048, %s770, [#allocation4], 128, 128, 8
    $region45: #{tpu_custom_call.1} parent=1 // pred_fallthru
      _
    // Predicated region
    $region46: #{tpu_custom_call.1} parent=1 // pred_check
      _
    $region47: #{tpu_custom_call.1} parent=1 // pred_check_branch
      %777 = sbr.rel (0) target = $region49
    $region48: #{tpu_custom_call.1} parent=1 // pred_region
      %779 = dma.done [#allocation4], 2048
    $region49: #{tpu_custom_call.1} parent=1 // pred_fallthru
      _
    %780 = vsyncpa [#allocation3], 1
    %781 = vsyncpa [#allocation6], 1
    %782 = vsyncpa [#allocation9], 1
    %783 = vsyncpa [#allocation4], 1

</llo_original>
